<compile_context>
chip_gen: v7x
topology: tpu7x:2x2x1
jax: 0.10.0
libtpu: 0.0.40
codegen_flags: <defaults>
</compile_context>

<pallas_src>
import functools

import jax
import jax.numpy as jnp
import numpy as np
from jax.experimental import pallas as pl
from jax.experimental.pallas import tpu as pltpu


def _round_up(a: int, b: int) -> int:
    return ((a + b - 1) // b) * b


def sine_layer_kernel(x_ref, w_ref, b_ref, o_ref, acc_ref, *, omega_0):
    # x_ref:   (tm, tk)   input rows tile
    # w_ref:   (tk, tn)   weight tile, already transposed to (in, out) layout
    # b_ref:   (1, tn)    bias row (zero-padded to lane-dense width)
    # o_ref:   (tm, tn)   output tile (lane-dense: tn % 128 == 0)
    # acc_ref: (tm, tn)   f32 accumulator scratch (valid across the K grid axis)
    k = pl.program_id(2)

    @pl.when(k == 0)
    def _():
        acc_ref[...] = jnp.zeros_like(acc_ref)

    # Canonical NN matmul on the MXU, f32 accumulation.
    acc_ref[...] += jnp.dot(x_ref[...], w_ref[...],
                            preferred_element_type=jnp.float32)

    @pl.when(k == pl.num_programs(2) - 1)
    def _():
        z = acc_ref[...] + b_ref[...]
        # omega_0 multiply is cheap VPU filler hidden under MXU/EUP latency.
        o_ref[...] = jnp.sin(omega_0 * z).astype(o_ref.dtype)


def sine_layer(x, weight, bias, omega_0=30.0, *, tm=512, use_bf16_matmul=False):
    """Pallas SineLayer forward: sin(omega_0 * (x @ weight.T + bias)).

    Args:
      x:      (M, K) float32 input.
      weight: (N, K) float32 — PyTorch nn.Linear layout (out_features, in_features).
      bias:   (N,)   float32.
      tm:     target row tile (sweep 512-2048 on real workloads; auto-clamped).
      use_bf16_matmul: cast x/W to bf16 for the MXU (f32 accumulation kept). Opt-in.
    Returns:
      (M, N) array with x.dtype.
    """
    M, K = x.shape
    N, K2 = weight.shape
    assert K == K2
    assert bias.shape == (N,)

    # ---- Generation-aware VMEM budget -------------------------------------------------
    vmem_cap = 64 * 1024 * 1024  # conservative fallback (v7x per-TC VMEM)
    try:
        vmem_cap = int(pltpu.get_tpu_info().vmem_capacity_bytes)
    except Exception:
        pass
    # ~96 MiB on 128-MiB parts (v5e/v6e), ~48 MiB on 64-MiB parts (v7x): headroom kept.
    vmem_limit = min(vmem_cap * 3 // 4, 100 * 1024 * 1024)
    weight_budget = max(4 * 1024 * 1024, vmem_cap // 8)

    x_itemsize = 2 if use_bf16_matmul else 4
    w_itemsize = 2 if use_bf16_matmul else 4

    # ---- Tile sizes --------------------------------------------------------------------
    n_pad = _round_up(N, 128)                       # lane-dense output width

    # N tiling only when the resident weight would be too large for VMEM.
    if n_pad * K * w_itemsize <= weight_budget:
        tn = n_pad
    else:
        tn_cap = max(128, (weight_budget // max(1, K * w_itemsize)) // 128 * 128)
        tn = 128
        d = 128
        while d <= min(n_pad, tn_cap):
            if n_pad % d == 0:
                tn = d
            d += 128
    num_n = n_pad // tn

    # K tiling only for very large, cleanly 128-divisible K (keeps partial K blocks out).
    if K > 2048 and K % 128 == 0:
        tk = 512 if K % 512 == 0 else (256 if K % 256 == 0 else 128)
    else:
        tk = K
    num_k = pl.cdiv(K, tk)

    # Row tile: multiple of 8, no larger than M (rounded), and >= 2 grid steps when
    # M allows it so both v7x TensorCores get work (cheap on single-TC parts).
    tm = max(8, _round_up(min(int(tm), _round_up(M, 8)), 8))
    if M > 8 and pl.cdiv(M, tm) < 2:
        tm = max(8, _round_up(pl.cdiv(M, 2), 8))

    w_bufs = 1 if (num_n == 1 and num_k == 1) else 2

    def _footprint(tm_):
        return (2 * tm_ * tk * x_itemsize          # double-buffered x tiles
                + 2 * tm_ * tn * 4                 # double-buffered output tiles
                + w_bufs * tk * tn * w_itemsize    # weight tile(s)
                + 2 * tn * 4                       # bias
                + tm_ * tn * 4)                    # accumulator scratch

    while tm > 8 and _footprint(tm) > vmem_limit - 4 * 1024 * 1024:
        tm = max(8, _round_up(tm // 2, 8))
    num_m = pl.cdiv(M, tm)

    # ---- One-time parameter prep (small vs. x traffic) ---------------------------------
    w_p = weight if n_pad == N else jnp.pad(weight, ((0, n_pad - N), (0, 0)))
    w_t = w_p.T                                    # (K, n_pad): NN matmul layout
    b_p = bias.reshape(1, N)
    if n_pad != N:
        b_p = jnp.pad(b_p, ((0, 0), (0, n_pad - N)))
    b_p = b_p.astype(jnp.float32)

    if use_bf16_matmul:
        x_in = x.astype(jnp.bfloat16)
        w_t = w_t.astype(jnp.bfloat16)
    else:
        x_in = x

    # Grid-invariant blocks don't need double-buffering.
    w_spec_kwargs = dict(pipeline_mode=pl.Buffered(1)) if (num_n == 1 and num_k == 1) else {}
    b_spec_kwargs = dict(pipeline_mode=pl.Buffered(1)) if num_n == 1 else {}

    cost = pl.CostEstimate(
        flops=2 * M * K * N,
        transcendentals=M * N,
        bytes_accessed=int(M * K * x_itemsize + K * n_pad * w_itemsize
                           + n_pad * 4 + M * n_pad * 4),
    )

    kernel = functools.partial(sine_layer_kernel, omega_0=float(omega_0))

    out = pl.pallas_call(
        kernel,
        out_shape=jax.ShapeDtypeStruct((M, n_pad), x.dtype),
        grid_spec=pltpu.PrefetchScalarGridSpec(
            num_scalar_prefetch=0,
            grid=(num_m, num_n, num_k),
            in_specs=[
                pl.BlockSpec((tm, tk), lambda i, j, k: (i, k)),                  # x rows
                pl.BlockSpec((tk, tn), lambda i, j, k: (k, j), **w_spec_kwargs),  # weight
                pl.BlockSpec((1, tn), lambda i, j, k: (0, j), **b_spec_kwargs),   # bias
            ],
            out_specs=pl.BlockSpec((tm, tn), lambda i, j, k: (i, j)),
            scratch_shapes=[pltpu.VMEM((tm, tn), jnp.float32)],
        ),
        compiler_params=pltpu.CompilerParams(
            dimension_semantics=("parallel", "parallel", "arbitrary"),
            vmem_limit_bytes=int(vmem_limit),
        ),
        cost_estimate=cost,
    )(x_in, w_t, b_p)

    # Only the padded columns are sliced off; copy-free when N % 128 == 0.
    return out if n_pad == N else out[:, :N]


if __name__ == "__main__":
    # Small shapes consistent with the module: (n_samples, in_features) -> (n_samples, out_features)
    M, in_features, out_features = 16, 32, 64
    omega_0 = 30.0

    key = jax.random.PRNGKey(0)
    kx, kw, kb = jax.random.split(key, 3)

    # Deterministic init mirroring SineLayer.init_weights (is_first=False branch):
    #   W ~ U(-sqrt(6/in)/omega_0, sqrt(6/in)/omega_0)
    # Bias keeps PyTorch nn.Linear default: U(-1/sqrt(in), 1/sqrt(in)).
    w_bound = float(np.sqrt(6.0 / in_features) / omega_0)
    b_bound = float(1.0 / np.sqrt(in_features))
    weight = jax.random.uniform(
        kw, (out_features, in_features), jnp.float32, -w_bound, w_bound
    )
    bias = jax.random.uniform(kb, (out_features,), jnp.float32, -b_bound, b_bound)
    x = jax.random.uniform(kx, (M, in_features), jnp.float32, -1.0, 1.0)

    out = sine_layer(x, weight, bias, omega_0)
    out = jax.block_until_ready(out)

    # Host-side float64 reference (avoids TPU default matmul-precision ambiguity).
    x64 = np.asarray(x, dtype=np.float64)
    w64 = np.asarray(weight, dtype=np.float64)
    b64 = np.asarray(bias, dtype=np.float64)
    ref = np.sin(omega_0 * (x64 @ w64.T + b64))

    assert out.shape == (M, out_features)
    np.testing.assert_allclose(np.asarray(out, dtype=np.float64), ref,
                               atol=1e-4, rtol=1e-4)

    print("KERNEL_OK")
</pallas_src>

<mosaic_0001>
module attributes {stable_mosaic.version = 11 : i64} {
  func.func @sine_layer_kernel(%arg0: i32, %arg1: i32, %arg2: i32, %arg3: memref<8x32xf32, #tpu.memory_space<vmem>>, %arg4: memref<32x128xf32, #tpu.memory_space<vmem>>, %arg5: memref<1x128xf32, #tpu.memory_space<vmem>>, %arg6: memref<8x128xf32, #tpu.memory_space<vmem>>, %arg7: memref<8x128xf32, #tpu.memory_space<vmem>>) attributes {dimension_semantics = [#tpu.dimension_semantics<parallel>, #tpu.dimension_semantics<parallel>, #tpu.dimension_semantics<arbitrary>], iteration_bounds = array<i64: 2, 1, 1>, scalar_prefetch = 0 : i64, scratch_operands = 1 : i64, tpu.core_type = #tpu.core_type<tc>, window_params = [{transform_indices = @transform_0, window_bounds = array<i64: 8, 32>}, {pipeline_mode = #tpu.pipeline_mode<synchronous>, transform_indices = @transform_1, window_bounds = array<i64: 32, 128>}, {pipeline_mode = #tpu.pipeline_mode<synchronous>, transform_indices = @transform_2, window_bounds = array<i64: 1, 128>}, {transform_indices = @transform_3, window_bounds = array<i64: 8, 128>}]} {
    %c0_i32 = arith.constant 0 : i32
    %0 = arith.cmpi eq, %arg2, %c0_i32 : i32
    %1 = arith.extui %0 : i1 to i32
    %c0_i32_0 = arith.constant 0 : i32
    %2 = arith.cmpi ne, %1, %c0_i32_0 : i32
    scf.if %2 {
      %cst_10 = arith.constant 0.000000e+00 : f32
      %12 = vector.broadcast %cst_10 : f32 to vector<8x128xf32>
      %c0_11 = arith.constant 0 : index
      %c0_12 = arith.constant 0 : index
      %13 = vector.load %arg7[%c0_11, %c0_12] : memref<8x128xf32, #tpu.memory_space<vmem>>, vector<8x128xf32>
      tpu.vector_store %arg7[%c0_11, %c0_12], %12 {strides = array<i32>} : memref<8x128xf32, #tpu.memory_space<vmem>>, vector<8x128xf32>,
    } else {
    }
    %c0 = arith.constant 0 : index
    %c0_1 = arith.constant 0 : index
    %3 = vector.load %arg7[%c0, %c0_1] : memref<8x128xf32, #tpu.memory_space<vmem>>, vector<8x128xf32>
    %c0_2 = arith.constant 0 : index
    %c0_3 = arith.constant 0 : index
    %4 = vector.load %arg3[%c0_2, %c0_3] : memref<8x32xf32, #tpu.memory_space<vmem>>, vector<8x32xf32>
    %c0_4 = arith.constant 0 : index
    %c0_5 = arith.constant 0 : index
    %5 = vector.load %arg4[%c0_4, %c0_5] : memref<32x128xf32, #tpu.memory_space<vmem>>, vector<32x128xf32>
    %cst = arith.constant dense<0.000000e+00> : vector<8x128xf32>
    %6 = tpu.matmul %4, %5, %cst {dimension_numbers = #tpu.dot_dimension_numbers<[1], [0], [0], [1], [0, 0, 1, 1], [], []>} : vector<8x32xf32>, vector<32x128xf32>, vector<8x128xf32> -> vector<8x128xf32>
    %7 = arith.addf %3, %6 : vector<8x128xf32>
    %c0_6 = arith.constant 0 : index
    %c0_7 = arith.constant 0 : index
    %8 = vector.load %arg7[%c0_6, %c0_7] : memref<8x128xf32, #tpu.memory_space<vmem>>, vector<8x128xf32>
    tpu.vector_store %arg7[%c0_6, %c0_7], %7 {strides = array<i32>} : memref<8x128xf32, #tpu.memory_space<vmem>>, vector<8x128xf32>,
    %c0_i32_8 = arith.constant 0 : i32
    %9 = arith.cmpi eq, %arg2, %c0_i32_8 : i32
    %10 = arith.extui %9 : i1 to i32
    %c0_i32_9 = arith.constant 0 : i32
    %11 = arith.cmpi ne, %10, %c0_i32_9 : i32
    scf.if %11 {
      %c0_10 = arith.constant 0 : index
      %c0_11 = arith.constant 0 : index
      %12 = vector.load %arg7[%c0_10, %c0_11] : memref<8x128xf32, #tpu.memory_space<vmem>>, vector<8x128xf32>
      %c0_12 = arith.constant 0 : index
      %c0_13 = arith.constant 0 : index
      %13 = vector.load %arg5[%c0_12, %c0_13] : memref<1x128xf32, #tpu.memory_space<vmem>>, vector<1x128xf32>
      %14 = vector.broadcast %13 : vector<1x128xf32> to vector<8x128xf32>
      %15 = arith.addf %12, %14 : vector<8x128xf32>
      %cst_14 = arith.constant 3.000000e+01 : f32
      %16 = vector.broadcast %cst_14 : f32 to vector<8x128xf32>
      %17 = arith.mulf %16, %15 : vector<8x128xf32>
      %18 = math.sin %17 : vector<8x128xf32>
      %c0_15 = arith.constant 0 : index
      %c0_16 = arith.constant 0 : index
      %19 = vector.load %arg6[%c0_15, %c0_16] : memref<8x128xf32, #tpu.memory_space<vmem>>, vector<8x128xf32>
      tpu.vector_store %arg6[%c0_15, %c0_16], %18 {strides = array<i32>} : memref<8x128xf32, #tpu.memory_space<vmem>>, vector<8x128xf32>,
    } else {
    }
    return
  }
  func.func @transform_0(%arg0: i32, %arg1: i32, %arg2: i32) -> (i32, i32) {
    %c0_i32 = arith.constant 0 : i32
    return %arg0, %arg2 : i32, i32
  }
  func.func @transform_1(%arg0: i32, %arg1: i32, %arg2: i32) -> (i32, i32) {
    %c0_i32 = arith.constant 0 : i32
    return %arg2, %arg1 : i32, i32
  }
  func.func @transform_2(%arg0: i32, %arg1: i32, %arg2: i32) -> (i32, i32) {
    %c0_i32 = arith.constant 0 : i32
    %c0_i32_0 = arith.constant 0 : i32
    return %c0_i32, %arg1 : i32, i32
  }
  func.func @transform_3(%arg0: i32, %arg1: i32, %arg2: i32) -> (i32, i32) {
    %c0_i32 = arith.constant 0 : i32
    return %arg0, %arg1 : i32, i32
  }
}

</mosaic_0001>

<llo_original>
// kernel: tpu_custom_call.1
$region0: #{tpu_custom_call.1}
  #allocation0 [shape = 'u32[]', space=smem, size = 0x4, offset = 0x4, fixed_abs, tag = 'smem constant byte address 0x4 - core index']
  #allocation1 [shape = 'u32[144,128]{1,0:T(1,128)}', space=vmem, size = 0x12000, scoped, tag = 'internal scratch']
  #allocation2 [shape = 'f32[8,128]{1,0:T(8,128)}', space=vmem, size = 0x1000, scoped, tag = 'scratch operand']
  %s0 = inlined_call_operand.hbm [shape: f32[16,32], index: 0, kind: input, shape index: {}]
  %s1 = inlined_call_operand.hbm [shape: f32[32,128], index: 1, kind: input, shape index: {}]
  %s2 = inlined_call_operand.vmem [shape: f32[1,128], index: 2, kind: input, shape index: {}]
  %s3 = inlined_call_operand.hbm [shape: f32[16,128], index: 3, kind: output, shape index: {}]
  %s4 = sld [smem:[#allocation0]]
  $region61: #{tpu_custom_call.1} parent=0
    _
  %s6 = ssub.s32 1, %s4
  %s7 = scalar_select 0, %s6, %s4
  $region1: #{tpu_custom_call.1} parent=0
    #allocation3 [shape = 'u8[8192]{0}', space=vmem, size = 0x2000, scoped, tag = 'input window, operand 0']
    #allocation4 [shape = 's32[2]{0}', space=sflag, size = 0x8, scoped, tag = 'scoped memory for tpu_custom_call.1']
    #allocation5 [shape = 's32[2]{0}', space=sflag, size = 0x8, scoped, tag = 'scoped memory for tpu_custom_call.1']
    #allocation6 [shape = 'u8[16384]{0}', space=vmem, size = 0x4000, scoped, tag = 'input window, operand 1, single buffered']
    #allocation7 [shape = 's32[1]{0}', space=sflag, size = 0x4, scoped, tag = 'scoped memory for tpu_custom_call.1']
    #allocation8 [shape = 'u8[8192]{0}', space=vmem, size = 0x2000, scoped, tag = 'output window, operand 0']
    %8 = vsyncpa [#allocation4], 0
    %s9 = scalar_lea.sflag [#allocation4], 1
    %10 = vsyncpa %s9, 0
    %11 = vsyncpa [#allocation7], 0
    %12 = vsyncpa [#allocation5], 0
    %s13 = scalar_lea.sflag [#allocation5], 1
    %14 = vsyncpa %s13, 0
    loop: start=0, step=1, limit=4
    $region2: #{tpu_custom_call.1} parent=1 // loop_pre_header
      _
    $region3: #{tpu_custom_call.1} parent=1 // loop_header
      %s16 = sphi 0, %s20
      %p17 = scmp.ge.s32.totalorder %s16, 4
      %s23 = sphi 0, %s42
      %s24 = sphi 0, %s38
      %s25 = sphi 0, %s34
      %s26 = sphi 0, %s23
      %s27 = sphi 0, %s24
      %s28 = sphi 0, %s25
      %s29 = sphi 0, %s26
      %s30 = sphi 0, %s27
      %s31 = sphi 0, %s28
      %s47 = sphi 0, %s49
      %s50 = sphi 0, %s47
      %s51 = sphi 0, %s50
      %s67 = sphi 0, %s51
      %s75 = sphi 0, %s77
      %s78 = sphi 0, %s75
      %s79 = sphi 0, %s78
      %s95 = sphi 0, %s79
      %s101 = sphi 0, %s103
      %s104 = sphi 0, %s101
      %s105 = sphi 0, %s104
      %s121 = sphi 0, %s105
      %s129 = sphi 0, %s131
      %s132 = sphi 0, %s129
      %s133 = sphi 0, %s132
      %s149 = sphi 0, %s133
    $region4: #{tpu_custom_call.1} parent=1 // loop_header_branch
      %19 = sbr.rel (%p17) target = $region8
    $region5: #{tpu_custom_call.1} parent=1 // loop_body
      %s21 = ssub.s32 %s16, 1
      %s22 = ssub.s32 %s16, 2
      %s32 = sadd.s32 1, %s25
      %p33 = scmp.ge.s32.totalorder %s32, 1
      %s34 = scalar_select %p33, 0, %s32
      %s35 = sadd.s32 1, %s24
      %s36 = scalar_select %p33, %s35, %s24
      %p37 = scmp.ge.s32.totalorder %s36, 1
      %s38 = scalar_select %p37, 0, %s36
      %s39 = sadd.s32 1, %s23
      %s40 = scalar_select %p37, %s39, %s23
      %p41 = scmp.ge.s32.totalorder %s40, 2
      %s42 = scalar_select %p41, 0, %s40
      %s43 = ssub.s32 %s23, %s42
      %s44 = ssub.s32 %s25, %s34
      %s45 = sor.u32 %s43, %s44
      %p46 = scmp.eq.s32.totalorder %s45, 0
      %s48 = sadd.s32 %s47, 1
      %s49 = scalar_select %p46, %s47, %s48
      %p52 = pneg %p46
      %p53 = scmp.eq.s32.totalorder %s16, 1
      %p54 = por %p52, %p53
      %p55 = scmp.ne.s32.totalorder %s47, %s50
      %p56 = scmp.eq.s32.totalorder %s16, 0
      %p57 = por %p55, %p56
      %p58 = scmp.ne.s32.totalorder %s47, %s50
      %p59 = scmp.eq.s32.totalorder %s21, 1
      %p60 = por %p58, %p59
      %p61 = scmp.ne.s32.totalorder %s50, %s51
      %p62 = scmp.eq.s32.totalorder %s21, 0
      %p63 = por %p61, %p62
      %p64 = scmp.ne.s32.totalorder %s50, %s51
      %p65 = scmp.eq.s32.totalorder %s22, 1
      %p66 = por %p64, %p65
      %p68 = scmp.ne.s32.totalorder %s51, %s67
      %p69 = scmp.eq.s32.totalorder %s22, 0
      %p70 = por %p68, %p69
      %s71 = ssub.s32 %s25, %s34
      %s72 = ssub.s32 %s24, %s38
      %s73 = sor.u32 %s71, %s72
      %p74 = scmp.eq.s32.totalorder %s73, 0
      %s76 = sadd.s32 %s75, 1
      %s77 = scalar_select %p74, %s75, %s76
      %p80 = pneg %p74
      %p81 = scmp.eq.s32.totalorder %s16, 1
      %p82 = por %p80, %p81
      %p83 = scmp.ne.s32.totalorder %s75, %s78
      %p84 = scmp.eq.s32.totalorder %s16, 0
      %p85 = por %p83, %p84
      %p86 = scmp.ne.s32.totalorder %s75, %s78
      %p87 = scmp.eq.s32.totalorder %s21, 1
      %p88 = por %p86, %p87
      %p89 = scmp.ne.s32.totalorder %s78, %s79
      %p90 = scmp.eq.s32.totalorder %s21, 0
      %p91 = por %p89, %p90
      %p92 = scmp.ne.s32.totalorder %s78, %s79
      %p93 = scmp.eq.s32.totalorder %s22, 1
      %p94 = por %p92, %p93
      %p96 = scmp.ne.s32.totalorder %s79, %s95
      %p97 = scmp.eq.s32.totalorder %s22, 0
      %p98 = por %p96, %p97
      %s99 = ssub.s32 %s24, %s38
      %p100 = scmp.eq.s32.totalorder %s99, 0
      %s102 = sadd.s32 %s101, 1
      %s103 = scalar_select %p100, %s101, %s102
      %p106 = pneg %p100
      %p107 = scmp.eq.s32.totalorder %s16, 1
      %p108 = por %p106, %p107
      %p109 = scmp.ne.s32.totalorder %s101, %s104
      %p110 = scmp.eq.s32.totalorder %s16, 0
      %p111 = por %p109, %p110
      %p112 = scmp.ne.s32.totalorder %s101, %s104
      %p113 = scmp.eq.s32.totalorder %s21, 1
      %p114 = por %p112, %p113
      %p115 = scmp.ne.s32.totalorder %s104, %s105
      %p116 = scmp.eq.s32.totalorder %s21, 0
      %p117 = por %p115, %p116
      %p118 = scmp.ne.s32.totalorder %s104, %s105
      %p119 = scmp.eq.s32.totalorder %s22, 1
      %p120 = por %p118, %p119
      %p122 = scmp.ne.s32.totalorder %s105, %s121
      %p123 = scmp.eq.s32.totalorder %s22, 0
      %p124 = por %p122, %p123
      %s125 = ssub.s32 %s23, %s42
      %s126 = ssub.s32 %s24, %s38
      %s127 = sor.u32 %s125, %s126
      %p128 = scmp.eq.s32.totalorder %s127, 0
      %s130 = sadd.s32 %s129, 1
      %s131 = scalar_select %p128, %s129, %s130
      %p134 = pneg %p128
      %p135 = scmp.eq.s32.totalorder %s16, 1
      %p136 = por %p134, %p135
      %p137 = scmp.ne.s32.totalorder %s129, %s132
      %p138 = scmp.eq.s32.totalorder %s16, 0
      %p139 = por %p137, %p138
      %p140 = scmp.ne.s32.totalorder %s129, %s132
      %p141 = scmp.eq.s32.totalorder %s21, 1
      %p142 = por %p140, %p141
      %p143 = scmp.ne.s32.totalorder %s132, %s133
      %p144 = scmp.eq.s32.totalorder %s21, 0
      %p145 = por %p143, %p144
      %p146 = scmp.ne.s32.totalorder %s132, %s133
      %p147 = scmp.eq.s32.totalorder %s22, 1
      %p148 = por %p146, %p147
      %p150 = scmp.ne.s32.totalorder %s133, %s149
      %p151 = scmp.eq.s32.totalorder %s22, 0
      %p152 = por %p150, %p151
      %p153 = scmp.le.s32.totalorder 1, %s16
      %p154 = scmp.lt.s32.totalorder %s16, 3
      %p155 = pnand %p153, %p154
      %p156 = pneg %p155
      // Predicated region
      $region9: #{tpu_custom_call.1} parent=5 // pred_check
        _
      $region10: #{tpu_custom_call.1} parent=5 // pred_check_branch
        %158 = sbr.rel (%p155) target = $region12
      $region11: #{tpu_custom_call.1} parent=5 // pred_region
        %s159 = ssub.s32 %s16, 1
        // Predicated region
        $region13: #{tpu_custom_call.1} parent=11 // pred_check
          %p160 = pneg %p91
        $region14: #{tpu_custom_call.1} parent=11 // pred_check_branch
          %162 = sbr.rel (%p160) target = $region16
        $region15: #{tpu_custom_call.1} parent=11 // pred_region
          %s163 = smul.u32 4, %s28
          %s165 = ssub.s32 512, 512
          %166 = vsyncadd [#allocation7], %s165
          %s167 = sadd.s32 %s27, %s163
          %s168 = smul.addr %s167, 128
          %s169 = scalar_lea.hbm %s1, %s168
          %s170 = sshll.u32 [#allocation6], 4
          %s171 = int_to_ptr.vmem [resolvable:$true] %s170
          %176 = dma.hbm_to_vmem [thread:$0]  %s169, 512, %s171, [#allocation7], 128, 128, 8
        $region16: #{tpu_custom_call.1} parent=11 // pred_fallthru
          _
        // Predicated region
        $region17: #{tpu_custom_call.1} parent=11 // pred_check
          %p177 = pneg %p117
        $region18: #{tpu_custom_call.1} parent=11 // pred_check_branch
          %179 = sbr.rel (%p177) target = $region20
        $region19: #{tpu_custom_call.1} parent=11 // pred_region
          %p180 = scmp.lt.s32.totalorder %s27, 0
          %s181 = scalar_select %p180, %s27, 0
          %s182 = scalar_lea.vmem %s2, %s181
        $region20: #{tpu_custom_call.1} parent=11 // pred_fallthru
          _
      $region12: #{tpu_custom_call.1} parent=5 // pred_fallthru
        _
      %p183 = scmp.lt.s32.totalorder %s16, 2
      // Predicated region
      $region21: #{tpu_custom_call.1} parent=5 // pred_check
        %p184 = pneg %p183
      $region22: #{tpu_custom_call.1} parent=5 // pred_check_branch
        %186 = sbr.rel (%p184) target = $region24
      $region23: #{tpu_custom_call.1} parent=5 // pred_region
        // Predicated region
        $region25: #{tpu_custom_call.1} parent=23 // pred_check
          %p187 = pneg %p57
        $region26: #{tpu_custom_call.1} parent=23 // pred_check_branch
          %189 = sbr.rel (%p187) target = $region28
        $region27: #{tpu_custom_call.1} parent=23 // pred_region
          %s190 = sand.u32 %s47, 1
          %s191 = scalar_lea.sflag [#allocation4], %s190
          %s192 = sand.u32 %s47, 1
          %s193 = smul.addr %s192, 8
          %s194 = scalar_lea.vmem [#allocation3], %s193
          %s196 = ssub.s32 128, 128
          %197 = vsyncadd %s191, %s196
          %s198 = sadd.s32 %s25, %s23
          %s199 = smul.addr %s198, 128
          %s200 = scalar_lea.hbm %s0, %s199
          %s202 = sshll.u32 %s194, 4
          %s203 = int_to_ptr.vmem [resolvable:$true] %s202
          %205 = dma.hbm_to_vmem [thread:$0]  %s200, 128, %s203, %s191
        $region28: #{tpu_custom_call.1} parent=23 // pred_fallthru
          _
      $region24: #{tpu_custom_call.1} parent=5 // pred_fallthru
        _
      %p206 = scmp.le.s32.totalorder 1, %s16
      %p207 = scmp.lt.s32.totalorder %s16, 3
      %p208 = pnand %p206, %p207
      %p209 = pneg %p208
      // Predicated region
      $region29: #{tpu_custom_call.1} parent=5 // pred_check
        _
      $region30: #{tpu_custom_call.1} parent=5 // pred_check_branch
        %211 = sbr.rel (%p208) target = $region32
      $region31: #{tpu_custom_call.1} parent=5 // pred_region
        %s212 = ssub.s32 %s16, 1
        %s213 = sand.u32 %s50, 1
        %s214 = scalar_lea.sflag [#allocation4], %s213
        %s215 = sand.u32 %s50, 1
        %s216 = smul.addr %s215, 8
        %s217 = scalar_lea.vmem [#allocation3], %s216
        // Predicated region
        $region33: #{tpu_custom_call.1} parent=31 // pred_check
          %p218 = pneg %p63
        $region34: #{tpu_custom_call.1} parent=31 // pred_check_branch
          %220 = sbr.rel (%p218) target = $region36
        $region35: #{tpu_custom_call.1} parent=31 // pred_region
          %221 = dma.done %s214, 128
        $region36: #{tpu_custom_call.1} parent=31 // pred_fallthru
          _
        // Predicated region
        $region37: #{tpu_custom_call.1} parent=31 // pred_check
          %p222 = pneg %p91
        $region38: #{tpu_custom_call.1} parent=31 // pred_check_branch
          %224 = sbr.rel (%p222) target = $region40
        $region39: #{tpu_custom_call.1} parent=31 // pred_region
          %225 = dma.done [#allocation7], 512
        $region40: #{tpu_custom_call.1} parent=31 // pred_fallthru
          _
        %s226 = sand.u32 %s50, 1
        %s227 = scalar_lea.sflag [#allocation4], %s226
        %s228 = sand.u32 %s50, 1
        %s229 = smul.addr %s228, 8
        %s230 = scalar_lea.vmem [#allocation3], %s229
        %p231 = pneg %p63
        %p232 = pneg %p60
        %p233 = pneg %p91
        %p234 = pneg %p88
        %p235 = scmp.lt.s32.totalorder %s27, 0
        %s236 = scalar_select %p235, %s27, 0
        %s237 = scalar_lea.vmem %s2, %s236
        %p238 = pneg %p117
        %p239 = pneg %p114
        %p240 = pneg %p145
        %p241 = pneg %p142
        %s242 = sand.u32 %s132, 1
        %s243 = scalar_lea.sflag [#allocation5], %s242
        %s244 = sand.u32 %s132, 1
        %s245 = smul.addr %s244, 8
        %s246 = scalar_lea.vmem [#allocation8], %s245
        %s247 = smul.u32 4, %s28
        %p248 = scmp.lt.s32.totalorder %s27, 0
        %s249 = scalar_select %p248, %s27, 0
        %s250 = scalar_lea.vmem %s2, %s249
        %p251 = scmp.eq.s32.totalorder %s28, 0
        // Predicated region
        $region41: #{tpu_custom_call.1} parent=31 // pred_check
          %p252 = pneg %p251
        $region42: #{tpu_custom_call.1} parent=31 // pred_check_branch
          %254 = sbr.rel (%p252) target = $region44
        $region43: #{tpu_custom_call.1} parent=31 // pred_region
          %255 = vst [vmem:[#allocation2] sm:$0xff] 0.0
        $region44: #{tpu_custom_call.1} parent=31 // pred_fallthru
          _
        %v256 = vld [vmem:[#allocation2] sm:$0xff]
        %v257 = vld [vmem:[%s217] sm:$0xff]
        %v258 = vld [vmem:[#allocation6] sm:$0xff]
        %v259 = vld [vmem:[#allocation6 + $0x8] sm:$0xff]
        %v260 = vld [vmem:[#allocation6 + $0x10] sm:$0xff]
        %v261 = vld [vmem:[#allocation6 + $0x18] sm:$0xff]
        %vm262 = vcmask 261120
        %v264 = vsel %vm262, %v257, 0
        %266 = vmatprep.subr.mxu0 0.0
        %267 = vmatpush1.msra.mxu0 %v258
        %268 = vmatprep.subr.mxu0 0.0
        %269 = vmatpush1.msra.mxu0 %v259
        %270 = vmatprep.subr.mxu0 0.0
        %271 = vmatpush1.msra.mxu0 %v260
        %272 = vmatprep.subr.mxu0 0.0
        %273 = vmatpush1.msra.mxu0 %v261
        %274 = vmatprep.subr.mxu0 0.0
        %275 = vmatpush1.msra.mxu0 0.0
        %276 = vmatprep.subr.mxu0 0.0
        %277 = vmatpush1.msra.mxu0 0.0
        %278 = vmatprep.subr.mxu0 0.0
        %279 = vmatpush1.msra.mxu0 0.0
        %280 = vmatprep.subr.mxu0 0.0
        %281 = vmatpush1.msra.mxu0 0.0
        %282 = vmatprep.subr.mxu0 0.0
        %283 = vmatpush1.msra.mxu0 0.0
        %284 = vmatprep.subr.mxu0 0.0
        %285 = vmatpush1.msra.mxu0 0.0
        %286 = vmatprep.subr.mxu0 0.0
        %287 = vmatpush1.msra.mxu0 0.0
        %288 = vmatprep.subr.mxu0 0.0
        %289 = vmatpush1.msra.mxu0 0.0
        %290 = vmatprep.subr.mxu0 0.0
        %291 = vmatpush1.msra.mxu0 0.0
        %292 = vmatprep.subr.mxu0 0.0
        %293 = vmatpush1.msra.mxu0 0.0
        %294 = vmatprep.subr.mxu0 0.0
        %295 = vmatpush1.msra.mxu0 0.0
        %296 = vmatprep.subr.mxu0 0.0
        %297 = vmatpush1.msra.mxu0 0.0
        %298 = vmatprep.subr.mxu0 0.0
        %299 = vmatpush1.msra.mxu0 0.0
        %300 = vmatprep.subr.mxu0 0.0
        %301 = vmatpush1.msra.mxu0 0.0
        %302 = vmatprep.subr.mxu0 0.0
        %303 = vmatpush1.msra.mxu0 0.0
        %304 = vmatprep.subr.mxu0 0.0
        %305 = vmatpush1.msra.mxu0 0.0
        %306 = vmatprep.subr.mxu0 0.0
        %307 = vmatpush1.msra.mxu0 0.0
        %308 = vmatprep.subr.mxu0 0.0
        %309 = vmatpush1.msra.mxu0 0.0
        %310 = vmatprep.subr.mxu0 0.0
        %311 = vmatpush1.msra.mxu0 0.0
        %312 = vmatprep.subr.mxu0 0.0
        %313 = vmatpush1.msra.mxu0 0.0
        %314 = vmatprep.subr.mxu0 0.0
        %315 = vmatpush1.msra.mxu0 0.0
        %316 = vmatprep.subr.mxu0 0.0
        %317 = vmatpush1.msra.mxu0 0.0
        %318 = vmatprep.subr.mxu0 0.0
        %319 = vmatpush1.msra.mxu0 0.0
        %320 = vmatprep.subr.mxu0 0.0
        %321 = vmatpush1.msra.mxu0 0.0
        %322 = vmatprep.subr.mxu0 0.0
        %323 = vmatpush1.msra.mxu0 0.0
        %324 = vmatprep.subr.mxu0 0.0
        %325 = vmatpush1.msra.mxu0 0.0
        %326 = vmatprep.subr.mxu0 0.0
        %327 = vmatpush1.msra.mxu0 0.0
        %328 = vmatprep.subr.mxu0 0.0
        %329 = vmatpush1.msra.mxu0 0.0
        %330 = vmatprep.mubr.f32.mxu0 0.0
        %331 = vmatmul.mubr.f32.gmra.mrb[0].mxu0 %v264
        %v332 = vpop.f32.mrb[0].mxu0
        %v333 = vadd.f32 0.0, %v332
        %v334 = vpop.f32.mrb[0].mxu0
        %335 = vdwg.mxu0
        %v336 = vadd.f32 %v256, %v333
        %337 = vst [vmem:[#allocation2] sm:$0xff] %v336
        // Predicated region
        $region45: #{tpu_custom_call.1} parent=31 // pred_check
          %p338 = pneg %p251
        $region46: #{tpu_custom_call.1} parent=31 // pred_check_branch
          %340 = sbr.rel (%p338) target = $region48
        $region47: #{tpu_custom_call.1} parent=31 // pred_region
          %v341 = vld [vmem:[#allocation2] sm:$0xff]
          %v342 = vld [vmem:[%s250] sm:$0x1]
          %v344 = vlaneseq
          %v345 = vshrl.u32 %v344, 7
          %v346 = vsub.s32 0, %v345
          %v347 = vrot.slane %v342, %v346
          %v349 = vadd.f32 %v341, %v347
          %v350 = vmul.f32 %v349, 30.0
          %v351 = vand.u32 2147483647, %v350
          %vm352 = vcmp.le.f32.partialorder %v351, 0.7853982
          %vm353 = vcmp.lt.s32.totalorder %v350, 0
          %v354 = vand.u32 %v350, 2139095040
          %v355 = vshrl.u32 %v354, 23
          %v356 = vsub.s32 %v355, 127
          %v357 = vand.u32 2147483647, %v350
          %v358 = vand.u32 %v357, 8388607
          %v359 = vor.u32 %v358, 8388608
          %v360 = vsub.s32 0, %v359
          %v361 = vadd.s32 %v356, 1
          %vm362 = vcmp.gt.s32.totalorder %v361, 0
          %v363 = vsel %vm362, %v361, 0
          %v364 = vshrl.u32 %v363, 5
          %v365 = vand.u32 %v363, 31
          %v366 = vsub.s32 32, %v365
          %v367 = vshrl.u32 683565275, %v366
          %v368 = vshll.u32 683565275, %v365
          %v369 = vshrl.u32 2475754826, %v366
          %v370 = vor.u32 %v368, %v369
          %v371 = vshll.u32 2475754826, %v365
          %v372 = vshrl.u32 2131351028, %v366
          %v373 = vor.u32 %v371, %v372
          %v374 = vshll.u32 2131351028, %v365
          %v375 = vshrl.u32 2102212464, %v366
          %v376 = vor.u32 %v374, %v375
          %v377 = vshll.u32 2102212464, %v365
          %v378 = vshrl.u32 920167782, %v366
          %v379 = vor.u32 %v377, %v378
          %v380 = vshll.u32 920167782, %v365
          %v381 = vshrl.u32 1326507024, %v366
          %v382 = vor.u32 %v380, %v381
          %vm383 = vcmp.lt.s32.totalorder %v364, 1
          %vm384 = vcmp.lt.s32.totalorder %v364, 2
          %vm385 = vcmp.lt.s32.totalorder %v364, 3
          %vm386 = vcmp.lt.s32.totalorder %v364, 4
          %v387 = vsel %vm383, %v367, %v370
          %v388 = vsel %vm386, %v376, 2102212464
          %v389 = vsel %vm385, %v373, %v388
          %v390 = vsel %vm384, %v387, %v389
          %v391 = vsel %vm383, %v370, %v373
          %v392 = vsel %vm386, %v379, 920167782
          %v393 = vsel %vm385, %v376, %v392
          %v394 = vsel %vm384, %v391, %v393
          %v395 = vsel %vm383, %v373, %v376
          %v396 = vsel %vm386, %v382, 1326507024
          %v397 = vsel %vm385, %v379, %v396
          %v398 = vsel %vm384, %v395, %v397
          %v399 = vshll.u32 %v359, 8
          %v400 = vmul.u32.u64.compose %v399, %v398
          %v401 = vextract.low.u32 %v400
          %v402 = vextract.high.u32 %v400
          %v403 = vmul.u32.u64.compose %v399, %v394
          %v404 = vextract.low.u32 %v403
          %v405 = vextract.high.u32 %v403
          %v406 = vmul.u32 %v399, %v390
          %v407 = vadd.s32 %v402, %v404
          %vm408 = vc.u32 %v402, %v404
          %v409 = vadd.s32 %v405, 1
          %v410 = vsel %vm408, %v409, %v405
          %v411 = vadd.s32 %v406, %v410
          %v412 = vadd.s32 %v411, 536870912
          %v413 = vshrl.u32 %v412, 30
          %v414 = vshll.u32 %v413, 30
          %v415 = vsub.s32 %v411, %v414
          %vm416 = vcmp.lt.s32.totalorder %v415, 0
          %v417 = vsub.s32 0, %v415
          %v418 = vsel %vm416, %v417, %v415
          %v419 = vclz %v418
          %v420 = vsub.s32 %v419, 2
          %vm421 = vcmp.gt.s32.totalorder 0, %v420
          %v422 = vsel %vm421, 0, %v420
          %v423 = vsub.s32 32, %v422
          %v424 = vshll.u32 %v415, %v422
          %v425 = vshrl.u32 %v407, %v423
          %v426 = vor.u32 %v424, %v425
          %v427 = vsub.s32 4294967266, %v422
          %v428 = vadd.s32 %v427, 127
          %v429 = vshll.u32 %v428, 23
          %v430 = vor.u32 4788187, %v429
          %v431 = vand.u32 2147483647, %v430
          %v433 = vcvt.s32.f32 %v426
          %v434 = vmul.f32 %v433, %v431
          %v435 = vxor.u32 %v434, 2147483648
          %v436 = vsel %vm353, %v435, %v434
          %v437 = vsub.s32 4, %v413
          %v438 = vsel %vm353, %v437, %v413
          %v439 = vsel %vm352, %v350, %v436
          %v440 = vsel %vm352, 0, %v438
          %v441 = vcosq.f32.pop %v439
          %v442 = vsinq.f32.pop %v439
          %vm443 = vweird.f32 %v350
          %v444 = vadd.s32 %v440, 3
          %v445 = vand.u32 %v444, 3
          %vm446 = vcmp.lt.s32.totalorder %v445, 2
          %vm447 = vcmp.eq.s32.totalorder %v445, 0
          %v448 = vxor.u32 %v442, 2147483648
          %v449 = vsel %vm447, %v441, %v448
          %vm450 = vcmp.eq.s32.totalorder %v445, 2
          %v451 = vxor.u32 %v441, 2147483648
          %v452 = vsel %vm450, %v451, %v442
          %v453 = vsel %vm446, %v449, %v452
          %v454 = vsel %vm443, nan, %v453
          %455 = vst [vmem:[%s246] sm:$0xff] %v454
        $region48: #{tpu_custom_call.1} parent=31 // pred_fallthru
          _
        %s456 = sand.u32 %s132, 1
        %s457 = scalar_lea.sflag [#allocation5], %s456
        %s458 = sand.u32 %s132, 1
        %s459 = smul.addr %s458, 8
        %s460 = scalar_lea.vmem [#allocation8], %s459
        // Predicated region
        $region49: #{tpu_custom_call.1} parent=31 // pred_check
          %p461 = pneg %p142
        $region50: #{tpu_custom_call.1} parent=31 // pred_check_branch
          %463 = sbr.rel (%p461) target = $region52
        $region51: #{tpu_custom_call.1} parent=31 // pred_region
          %s465 = ssub.s32 128, 128
          %466 = vsyncadd %s457, %s465
          %s467 = sadd.s32 %s27, %s26
          %s468 = smul.addr %s467, 128
          %s469 = scalar_lea.hbm %s3, %s468
          %s471 = sshll.u32 %s460, 4
          %s472 = int_to_ptr.vmem [resolvable:$true] %s471
          %474 = dma.vmem_to_hbm [thread:$0]  %s472, 128, %s469, %s457
        $region52: #{tpu_custom_call.1} parent=31 // pred_fallthru
          _
      $region32: #{tpu_custom_call.1} parent=5 // pred_fallthru
        _
      %p475 = scmp.le.s32.totalorder 2, %s16
      // Predicated region
      $region53: #{tpu_custom_call.1} parent=5 // pred_check
        %p476 = pneg %p475
      $region54: #{tpu_custom_call.1} parent=5 // pred_check_branch
        %478 = sbr.rel (%p476) target = $region56
      $region55: #{tpu_custom_call.1} parent=5 // pred_region
        %s479 = ssub.s32 %s16, 2
        // Predicated region
        $region57: #{tpu_custom_call.1} parent=55 // pred_check
          %p480 = pneg %p148
        $region58: #{tpu_custom_call.1} parent=55 // pred_check_branch
          %482 = sbr.rel (%p480) target = $region60
        $region59: #{tpu_custom_call.1} parent=55 // pred_region
          %s483 = sand.u32 %s133, 1
          %s484 = scalar_lea.sflag [#allocation5], %s483
          %s485 = sand.u32 %s133, 1
          %s486 = smul.addr %s485, 8
          %s487 = scalar_lea.vmem [#allocation8], %s486
          %488 = dma.done %s484, 128
        $region60: #{tpu_custom_call.1} parent=55 // pred_fallthru
          _
      $region56: #{tpu_custom_call.1} parent=5 // pred_fallthru
        _
    $region6: #{tpu_custom_call.1} parent=1 // loop_footer
      %s20 = sadd.s32 1, %s16
    $region7: #{tpu_custom_call.1} parent=1 // loop_footer_branch
      %15 = sbr.rel target = $region3
    $region8: #{tpu_custom_call.1} parent=1 // loop_exit
      _
    %489 = vsyncpa [#allocation4], 1
    %s490 = scalar_lea.sflag [#allocation4], 1
    %491 = vsyncpa %s490, 1
    %492 = vsyncpa [#allocation7], 1
    %493 = vsyncpa [#allocation5], 1
    %s494 = scalar_lea.sflag [#allocation5], 1
    %495 = vsyncpa %s494, 1

</llo_original>
